<compile_context>
chip_gen: v5e
topology: v5e:2x2
jax: 0.10.0
libtpu: 0.0.40
codegen_flags: <defaults>
</compile_context>

<pallas_src>
import jax
import jax.numpy as jnp
from jax.experimental import pallas as pl
from jax.experimental.pallas import tpu as pltpu


def _relu_dapa_kernel(p0_ref, p1_ref, c2_ref, mask_ref, x_ref, o_ref):
    # x_ref block:   (1, C', S_TILE)
    # param blocks:  (C', 1)        (resident across all grid steps)
    # mask block:    (C', S_TILE)   int8, resident across the inner (batch) axis
    x = x_ref[...].astype(jnp.float32)
    p0 = p0_ref[...]
    p1 = p1_ref[...]
    c2 = c2_ref[...]                       # = p2 * scale_x2 (folded in wrapper)
    poly = p0 + x * (p1 + c2 * x)          # Horner form
    m = mask_ref[...].astype(jnp.int32)    # cheap i8 -> i32 unpack
    out = jnp.where(m != 0, jnp.maximum(x, 0.0), poly)
    o_ref[...] = out.astype(o_ref.dtype)


def _pick_channel_merge(c: int, h: int, w: int) -> int:
    """Factor Hf of H to fold into the channel/sublane axis when C < 8.

    Prefers the smallest divisor giving C*Hf a multiple of 8; only merges when
    the remaining spatial extent stays >= 128 (keeps lanes dense)."""
    if c >= 8:
        return 1
    divisors = [d for d in range(2, h + 1) if h % d == 0]
    for d in divisors:
        if (c * d) % 8 == 0 and (h // d) * w >= 128:
            return d
    for d in divisors:
        if c * d >= 8 and (h // d) * w >= 128:
            return d
    return 1


def _pick_spatial_tile(s_full: int, cm: int, x_bytes: int, mask_bytes: int,
                       budget_bytes: int) -> int:
    """Largest multiple-of-128 divisor of s_full whose pipelined footprint
    (double-buffered x + out + mask blocks, real dtypes) fits the budget."""
    per_col = cm * (4 * x_bytes + 2 * mask_bytes)   # 2*(x+out)*xb + 2*mask*mb per lane-col
    cap = (budget_bytes // max(per_col, 1)) // 128 * 128
    cap = min(cap, s_full)
    for s in range(cap, 127, -128):
        if s_full % s == 0:
            return s
    # Minimum lane-dense tile; only exceeds the soft budget for absurd channel
    # counts (>~20k merged channels), still far under the 48 MiB scoped limit
    # for any realistic CNN layer.
    return 128


def relu_masked_dapa_relay(x, alpha_mask, p0, p1, p2, scale_x2):
    """out = relu(x)*mask + poly(x)*(1-mask) with mask in {0,1}.

    x:          (N, C, H, W)
    alpha_mask: (C, H, W)        binary mask (STE forward returns it unchanged)
    p0/p1/p2:   (1, C, 1, 1)     per-channel degree-2 poly coefficients
    """
    n, c, h, w = x.shape

    # Sublane-occupancy fix for thin-channel layers.
    hf = _pick_channel_merge(c, h, w)
    cm = c * hf
    s = (h // hf) * w

    x3 = x.reshape(n, cm, s)
    # Module guarantees a binary mask; carry it as int8 to quarter mask traffic.
    mask2 = (alpha_mask.reshape(cm, s) != 0).astype(jnp.int8)
    p0c = jnp.repeat(p0.reshape(c, 1).astype(jnp.float32), hf, axis=0)
    p1c = jnp.repeat(p1.reshape(c, 1).astype(jnp.float32), hf, axis=0)
    c2c = jnp.repeat((p2.reshape(c, 1) * jnp.float32(scale_x2)).astype(jnp.float32),
                     hf, axis=0)

    # Lane-dense stores: pad spatial up to a multiple of 128 if needed.
    s_pad = (-s) % 128
    s_full = s + s_pad
    if s_pad:
        x3 = jnp.pad(x3, ((0, 0), (0, 0), (0, s_pad)))
        mask2 = jnp.pad(mask2, ((0, 0), (0, s_pad)))

    x_bytes = jnp.dtype(x.dtype).itemsize
    s_tile = _pick_spatial_tile(s_full, cm, x_bytes, 1,
                                budget_bytes=24 * 1024 * 1024)
    grid = (s_full // s_tile, n)   # batch is the INNER axis -> mask stays resident

    cost = pl.CostEstimate(
        flops=6 * n * c * h * w,
        transcendentals=0,
        # x read + out write + mask read once per spatial tile + params
        bytes_accessed=2 * n * cm * s_full * x_bytes + cm * s_full + 3 * cm * 4,
    )

    out = pl.pallas_call(
        _relu_dapa_kernel,
        out_shape=jax.ShapeDtypeStruct((n, cm, s_full), x.dtype),
        grid_spec=pltpu.PrefetchScalarGridSpec(
            num_scalar_prefetch=0,
            grid=grid,
            in_specs=[
                pl.BlockSpec((cm, 1), lambda si, bi: (0, 0)),              # p0 (resident)
                pl.BlockSpec((cm, 1), lambda si, bi: (0, 0)),              # p1 (resident)
                pl.BlockSpec((cm, 1), lambda si, bi: (0, 0)),              # p2*scale_x2 (resident)
                pl.BlockSpec((cm, s_tile), lambda si, bi: (0, si)),        # mask (resident over batch)
                pl.BlockSpec((1, cm, s_tile), lambda si, bi: (bi, 0, si)), # x
            ],
            out_specs=pl.BlockSpec((1, cm, s_tile), lambda si, bi: (bi, 0, si)),
        ),
        compiler_params=pltpu.CompilerParams(
            dimension_semantics=("parallel", "parallel"),
            vmem_limit_bytes=48 * 1024 * 1024,
        ),
        cost_estimate=cost,
    )(p0c, p1c, c2c, mask2, x3)

    if s_pad:
        out = out[:, :, :s]
    return out.reshape(n, c, h, w)


if __name__ == "__main__":
    # TODO(synk): only the forward activation math is implemented; stateful
    # training-time bookkeeping (init_w_aux, update_mask, update_poly BN stats,
    # itr_cnt, Dropout2d — unused in forward) is handled outside the kernel.
    key = jax.random.PRNGKey(0)
    k1, k2, k3, k4, k5 = jax.random.split(key, 5)

    N, C, H, W = 2, 4, 16, 16
    x = jax.random.normal(k1, (N, C, H, W), dtype=jnp.float32)
    # alpha_mask is initialized to all-ones by the module; mix in zeros here so
    # both the ReLU branch and the poly branch are exercised.
    alpha_mask = (jax.random.uniform(k2, (C, H, W)) > 0.5).astype(jnp.float32)
    p0 = jax.random.uniform(k3, (1, C, 1, 1), minval=0.0, maxval=1e-4)
    p1 = jax.random.uniform(k4, (1, C, 1, 1), minval=1.0, maxval=1.0001)
    p2 = jax.random.uniform(k5, (1, C, 1, 1), minval=0.0, maxval=1e-4)
    scale_x2 = 1.0

    out = jax.block_until_ready(
        relu_masked_dapa_relay(x, alpha_mask, p0, p1, p2, scale_x2)
    )

    # Pure-JAX reference check (blend form of the PyTorch module).
    mask_e = jnp.broadcast_to(alpha_mask[None], x.shape)
    poly = p0 + p1 * x + p2 * scale_x2 * x * x
    ref = jnp.maximum(x, 0.0) * mask_e + poly * (1.0 - mask_e)
    assert out.shape == x.shape and out.dtype == x.dtype
    assert jnp.allclose(out, ref, atol=1e-5, rtol=1e-5), "mismatch vs reference"

    print("KERNEL_OK")
</pallas_src>

<mosaic_0001>
module attributes {stable_mosaic.version = 11 : i64} {
  func.func @_relu_dapa_kernel(%arg0: i32, %arg1: i32, %arg2: memref<8x1xf32, #tpu.memory_space<vmem>>, %arg3: memref<8x1xf32, #tpu.memory_space<vmem>>, %arg4: memref<8x1xf32, #tpu.memory_space<vmem>>, %arg5: memref<8x128xi8, #tpu.memory_space<vmem>>, %arg6: memref<1x8x128xf32, #tpu.memory_space<vmem>>, %arg7: memref<1x8x128xf32, #tpu.memory_space<vmem>>) attributes {dimension_semantics = [#tpu.dimension_semantics<parallel>, #tpu.dimension_semantics<parallel>], iteration_bounds = array<i64: 1, 2>, scalar_prefetch = 0 : i64, scratch_operands = 0 : i64, tpu.core_type = #tpu.core_type<tc>, window_params = [{pipeline_mode = #tpu.pipeline_mode<synchronous>, transform_indices = @transform_0, window_bounds = array<i64: 8, 1>}, {pipeline_mode = #tpu.pipeline_mode<synchronous>, transform_indices = @transform_1, window_bounds = array<i64: 8, 1>}, {pipeline_mode = #tpu.pipeline_mode<synchronous>, transform_indices = @transform_2, window_bounds = array<i64: 8, 1>}, {transform_indices = @transform_3, window_bounds = array<i64: 8, 128>}, {transform_indices = @transform_4, window_bounds = array<i64: 1, 8, 128>}, {transform_indices = @transform_5, window_bounds = array<i64: 1, 8, 128>}]} {
    %c0 = arith.constant 0 : index
    %c0_0 = arith.constant 0 : index
    %c0_1 = arith.constant 0 : index
    %0 = vector.load %arg6[%c0, %c0_0, %c0_1] : memref<1x8x128xf32, #tpu.memory_space<vmem>>, vector<1x8x128xf32>
    %c0_2 = arith.constant 0 : index
    %c0_3 = arith.constant 0 : index
    %1 = vector.load %arg2[%c0_2, %c0_3] : memref<8x1xf32, #tpu.memory_space<vmem>>, vector<8x1xf32>
    %c0_4 = arith.constant 0 : index
    %c0_5 = arith.constant 0 : index
    %2 = vector.load %arg3[%c0_4, %c0_5] : memref<8x1xf32, #tpu.memory_space<vmem>>, vector<8x1xf32>
    %c0_6 = arith.constant 0 : index
    %c0_7 = arith.constant 0 : index
    %3 = vector.load %arg4[%c0_6, %c0_7] : memref<8x1xf32, #tpu.memory_space<vmem>>, vector<8x1xf32>
    %4 = vector.shape_cast %3 : vector<8x1xf32> to vector<1x8x1xf32>
    %5 = vector.broadcast %4 : vector<1x8x1xf32> to vector<1x8x128xf32>
    %6 = arith.mulf %5, %0 : vector<1x8x128xf32>
    %7 = vector.shape_cast %2 : vector<8x1xf32> to vector<1x8x1xf32>
    %8 = vector.broadcast %7 : vector<1x8x1xf32> to vector<1x8x128xf32>
    %9 = arith.addf %8, %6 : vector<1x8x128xf32>
    %10 = arith.mulf %0, %9 : vector<1x8x128xf32>
    %11 = vector.shape_cast %1 : vector<8x1xf32> to vector<1x8x1xf32>
    %12 = vector.broadcast %11 : vector<1x8x1xf32> to vector<1x8x128xf32>
    %13 = arith.addf %12, %10 : vector<1x8x128xf32>
    %c0_8 = arith.constant 0 : index
    %c0_9 = arith.constant 0 : index
    %14 = vector.load %arg5[%c0_8, %c0_9] : memref<8x128xi8, #tpu.memory_space<vmem>>, vector<8x128xi8>
    %15 = arith.extsi %14 : vector<8x128xi8> to vector<8x128xi32>
    %c0_i32 = arith.constant 0 : i32
    %16 = vector.broadcast %c0_i32 : i32 to vector<8x128xi32>
    %17 = arith.cmpi ne, %15, %16 : vector<8x128xi32>
    %cst = arith.constant 0.000000e+00 : f32
    %18 = vector.broadcast %cst : f32 to vector<1x8x128xf32>
    %19 = arith.maximumf %0, %18 : vector<1x8x128xf32>
    %20 = vector.shape_cast %17 : vector<8x128xi1> to vector<1x8x128xi1>
    %21 = arith.select %20, %19, %13 : vector<1x8x128xi1>, vector<1x8x128xf32>
    %c0_10 = arith.constant 0 : index
    %c0_11 = arith.constant 0 : index
    %c0_12 = arith.constant 0 : index
    %22 = vector.load %arg7[%c0_10, %c0_11, %c0_12] : memref<1x8x128xf32, #tpu.memory_space<vmem>>, vector<1x8x128xf32>
    tpu.vector_store %arg7[%c0_10, %c0_11, %c0_12], %21 {strides = array<i32>} : memref<1x8x128xf32, #tpu.memory_space<vmem>>, vector<1x8x128xf32>,
    return
  }
  func.func @transform_0(%arg0: i32, %arg1: i32) -> (i32, i32) {
    %c0_i32 = arith.constant 0 : i32
    %c0_i32_0 = arith.constant 0 : i32
    %c0_i32_1 = arith.constant 0 : i32
    return %c0_i32, %c0_i32_0 : i32, i32
  }
  func.func @transform_1(%arg0: i32, %arg1: i32) -> (i32, i32) {
    %c0_i32 = arith.constant 0 : i32
    %c0_i32_0 = arith.constant 0 : i32
    %c0_i32_1 = arith.constant 0 : i32
    return %c0_i32, %c0_i32_0 : i32, i32
  }
  func.func @transform_2(%arg0: i32, %arg1: i32) -> (i32, i32) {
    %c0_i32 = arith.constant 0 : i32
    %c0_i32_0 = arith.constant 0 : i32
    %c0_i32_1 = arith.constant 0 : i32
    return %c0_i32, %c0_i32_0 : i32, i32
  }
  func.func @transform_3(%arg0: i32, %arg1: i32) -> (i32, i32) {
    %c0_i32 = arith.constant 0 : i32
    %c0_i32_0 = arith.constant 0 : i32
    return %c0_i32, %arg0 : i32, i32
  }
  func.func @transform_4(%arg0: i32, %arg1: i32) -> (i32, i32, i32) {
    %c0_i32 = arith.constant 0 : i32
    %c0_i32_0 = arith.constant 0 : i32
    return %arg1, %c0_i32, %arg0 : i32, i32, i32
  }
  func.func @transform_5(%arg0: i32, %arg1: i32) -> (i32, i32, i32) {
    %c0_i32 = arith.constant 0 : i32
    %c0_i32_0 = arith.constant 0 : i32
    return %arg1, %c0_i32, %arg0 : i32, i32, i32
  }
}

</mosaic_0001>

<llo_original>
// kernel: tpu_custom_call.1
$region0: #{tpu_custom_call.1}
  #allocation0 [shape = 'u32[]', space=smem, size = 0x4, offset = 0x4, fixed_abs, tag = 'smem constant byte address 0x4 - core index']
  #allocation1 [shape = 'u32[72,128]{1,0:T(1,128)}', space=vmem, size = 0x9000, scoped, tag = 'internal scratch']
  %s0 = inlined_call_operand.vmem [shape: f32[8,1], index: 0, kind: input, shape index: {}]
  %s1 = inlined_call_operand.vmem [shape: f32[8,1], index: 1, kind: input, shape index: {}]
  %s2 = inlined_call_operand.vmem [shape: f32[8,1], index: 2, kind: input, shape index: {}]
  %s3 = inlined_call_operand.vmem [shape: s8[8,128], index: 3, kind: input, shape index: {}]
  %s4 = inlined_call_operand.vmem [shape: f32[2,8,128], index: 4, kind: input, shape index: {}]
  %s5 = inlined_call_operand.hbm [shape: f32[2,8,128], index: 5, kind: output, shape index: {}]
  %s6 = sld [smem:[#allocation0]]
  $region53: #{tpu_custom_call.1} parent=0
    _
  %s8 = ssub.s32 1, %s6
  %s9 = scalar_select 0, %s8, %s6
  $region1: #{tpu_custom_call.1} parent=0
    #allocation2 [shape = 'u8[8192]{0}', space=vmem, size = 0x2000, scoped, tag = 'output window, operand 0']
    #allocation3 [shape = 's32[2]{0}', space=sflag, size = 0x8, scoped, tag = 'scoped memory for tpu_custom_call.1']
    %10 = vsyncpa [#allocation3], 0
    %s11 = scalar_lea.sflag [#allocation3], 1
    %12 = vsyncpa %s11, 0
    loop: start=0, step=1, limit=4
    $region2: #{tpu_custom_call.1} parent=1 // loop_pre_header
      _
    $region3: #{tpu_custom_call.1} parent=1 // loop_header
      %s14 = sphi 0, %s18
      %p15 = scmp.ge.s32.totalorder %s14, 4
      %s21 = sphi 0, %s33
      %s22 = sphi 0, %s29
      %s23 = sphi 0, %s21
      %s24 = sphi 0, %s22
      %s25 = sphi 0, %s23
      %s26 = sphi 0, %s24
      %s34 = sphi 0, %s34
      %s36 = sphi 0, %s34
      %s37 = sphi 0, %s36
      %s51 = sphi 0, %s37
      %s55 = sphi 0, %s55
      %s57 = sphi 0, %s55
      %s58 = sphi 0, %s57
      %s72 = sphi 0, %s58
      %s76 = sphi 0, %s76
      %s78 = sphi 0, %s76
      %s79 = sphi 0, %s78
      %s93 = sphi 0, %s79
      %s99 = sphi 0, %s101
      %s102 = sphi 0, %s99
      %s103 = sphi 0, %s102
      %s119 = sphi 0, %s103
      %s127 = sphi 0, %s129
      %s130 = sphi 0, %s127
      %s131 = sphi 0, %s130
      %s147 = sphi 0, %s131
      %s155 = sphi 0, %s157
      %s158 = sphi 0, %s155
      %s159 = sphi 0, %s158
      %s175 = sphi 0, %s159
    $region4: #{tpu_custom_call.1} parent=1 // loop_header_branch
      %17 = sbr.rel (%p15) target = $region8
    $region5: #{tpu_custom_call.1} parent=1 // loop_body
      %s19 = ssub.s32 %s14, 1
      %s20 = ssub.s32 %s14, 2
      %s27 = sadd.s32 1, %s22
      %p28 = scmp.ge.s32.totalorder %s27, 2
      %s29 = scalar_select %p28, 0, %s27
      %s30 = sadd.s32 1, %s21
      %s31 = scalar_select %p28, %s30, %s21
      %p32 = scmp.ge.s32.totalorder %s31, 1
      %s33 = scalar_select %p32, 0, %s31
      %s35 = sadd.s32 %s34, 1
      %p38 = scmp.eq.s32.totalorder %s14, 1
      %p39 = scmp.ne.s32.totalorder %s34, %s36
      %p40 = scmp.eq.s32.totalorder %s14, 0
      %p41 = por %p39, %p40
      %p42 = scmp.ne.s32.totalorder %s34, %s36
      %p43 = scmp.eq.s32.totalorder %s19, 1
      %p44 = por %p42, %p43
      %p45 = scmp.ne.s32.totalorder %s36, %s37
      %p46 = scmp.eq.s32.totalorder %s19, 0
      %p47 = por %p45, %p46
      %p48 = scmp.ne.s32.totalorder %s36, %s37
      %p49 = scmp.eq.s32.totalorder %s20, 1
      %p50 = por %p48, %p49
      %p52 = scmp.ne.s32.totalorder %s37, %s51
      %p53 = scmp.eq.s32.totalorder %s20, 0
      %p54 = por %p52, %p53
      %s56 = sadd.s32 %s55, 1
      %p59 = scmp.eq.s32.totalorder %s14, 1
      %p60 = scmp.ne.s32.totalorder %s55, %s57
      %p61 = scmp.eq.s32.totalorder %s14, 0
      %p62 = por %p60, %p61
      %p63 = scmp.ne.s32.totalorder %s55, %s57
      %p64 = scmp.eq.s32.totalorder %s19, 1
      %p65 = por %p63, %p64
      %p66 = scmp.ne.s32.totalorder %s57, %s58
      %p67 = scmp.eq.s32.totalorder %s19, 0
      %p68 = por %p66, %p67
      %p69 = scmp.ne.s32.totalorder %s57, %s58
      %p70 = scmp.eq.s32.totalorder %s20, 1
      %p71 = por %p69, %p70
      %p73 = scmp.ne.s32.totalorder %s58, %s72
      %p74 = scmp.eq.s32.totalorder %s20, 0
      %p75 = por %p73, %p74
      %s77 = sadd.s32 %s76, 1
      %p80 = scmp.eq.s32.totalorder %s14, 1
      %p81 = scmp.ne.s32.totalorder %s76, %s78
      %p82 = scmp.eq.s32.totalorder %s14, 0
      %p83 = por %p81, %p82
      %p84 = scmp.ne.s32.totalorder %s76, %s78
      %p85 = scmp.eq.s32.totalorder %s19, 1
      %p86 = por %p84, %p85
      %p87 = scmp.ne.s32.totalorder %s78, %s79
      %p88 = scmp.eq.s32.totalorder %s19, 0
      %p89 = por %p87, %p88
      %p90 = scmp.ne.s32.totalorder %s78, %s79
      %p91 = scmp.eq.s32.totalorder %s20, 1
      %p92 = por %p90, %p91
      %p94 = scmp.ne.s32.totalorder %s79, %s93
      %p95 = scmp.eq.s32.totalorder %s20, 0
      %p96 = por %p94, %p95
      %s97 = ssub.s32 %s21, %s33
      %p98 = scmp.eq.s32.totalorder %s97, 0
      %s100 = sadd.s32 %s99, 1
      %s101 = scalar_select %p98, %s99, %s100
      %p104 = pneg %p98
      %p105 = scmp.eq.s32.totalorder %s14, 1
      %p106 = por %p104, %p105
      %p107 = scmp.ne.s32.totalorder %s99, %s102
      %p108 = scmp.eq.s32.totalorder %s14, 0
      %p109 = por %p107, %p108
      %p110 = scmp.ne.s32.totalorder %s99, %s102
      %p111 = scmp.eq.s32.totalorder %s19, 1
      %p112 = por %p110, %p111
      %p113 = scmp.ne.s32.totalorder %s102, %s103
      %p114 = scmp.eq.s32.totalorder %s19, 0
      %p115 = por %p113, %p114
      %p116 = scmp.ne.s32.totalorder %s102, %s103
      %p117 = scmp.eq.s32.totalorder %s20, 1
      %p118 = por %p116, %p117
      %p120 = scmp.ne.s32.totalorder %s103, %s119
      %p121 = scmp.eq.s32.totalorder %s20, 0
      %p122 = por %p120, %p121
      %s123 = ssub.s32 %s22, %s29
      %s124 = ssub.s32 %s21, %s33
      %s125 = sor.u32 %s123, %s124
      %p126 = scmp.eq.s32.totalorder %s125, 0
      %s128 = sadd.s32 %s127, 1
      %s129 = scalar_select %p126, %s127, %s128
      %p132 = pneg %p126
      %p133 = scmp.eq.s32.totalorder %s14, 1
      %p134 = por %p132, %p133
      %p135 = scmp.ne.s32.totalorder %s127, %s130
      %p136 = scmp.eq.s32.totalorder %s14, 0
      %p137 = por %p135, %p136
      %p138 = scmp.ne.s32.totalorder %s127, %s130
      %p139 = scmp.eq.s32.totalorder %s19, 1
      %p140 = por %p138, %p139
      %p141 = scmp.ne.s32.totalorder %s130, %s131
      %p142 = scmp.eq.s32.totalorder %s19, 0
      %p143 = por %p141, %p142
      %p144 = scmp.ne.s32.totalorder %s130, %s131
      %p145 = scmp.eq.s32.totalorder %s20, 1
      %p146 = por %p144, %p145
      %p148 = scmp.ne.s32.totalorder %s131, %s147
      %p149 = scmp.eq.s32.totalorder %s20, 0
      %p150 = por %p148, %p149
      %s151 = ssub.s32 %s22, %s29
      %s152 = ssub.s32 %s21, %s33
      %s153 = sor.u32 %s151, %s152
      %p154 = scmp.eq.s32.totalorder %s153, 0
      %s156 = sadd.s32 %s155, 1
      %s157 = scalar_select %p154, %s155, %s156
      %p160 = pneg %p154
      %p161 = scmp.eq.s32.totalorder %s14, 1
      %p162 = por %p160, %p161
      %p163 = scmp.ne.s32.totalorder %s155, %s158
      %p164 = scmp.eq.s32.totalorder %s14, 0
      %p165 = por %p163, %p164
      %p166 = scmp.ne.s32.totalorder %s155, %s158
      %p167 = scmp.eq.s32.totalorder %s19, 1
      %p168 = por %p166, %p167
      %p169 = scmp.ne.s32.totalorder %s158, %s159
      %p170 = scmp.eq.s32.totalorder %s19, 0
      %p171 = por %p169, %p170
      %p172 = scmp.ne.s32.totalorder %s158, %s159
      %p173 = scmp.eq.s32.totalorder %s20, 1
      %p174 = por %p172, %p173
      %p176 = scmp.ne.s32.totalorder %s159, %s175
      %p177 = scmp.eq.s32.totalorder %s20, 0
      %p178 = por %p176, %p177
      %p179 = scmp.le.s32.totalorder 1, %s14
      %p180 = scmp.lt.s32.totalorder %s14, 3
      %p181 = pnand %p179, %p180
      %p182 = pneg %p181
      // Predicated region
      $region9: #{tpu_custom_call.1} parent=5 // pred_check
        _
      $region10: #{tpu_custom_call.1} parent=5 // pred_check_branch
        %184 = sbr.rel (%p181) target = $region12
      $region11: #{tpu_custom_call.1} parent=5 // pred_region
        %s185 = ssub.s32 %s14, 1
        // Predicated region
        $region13: #{tpu_custom_call.1} parent=11 // pred_check
          %p186 = pneg %p47
        $region14: #{tpu_custom_call.1} parent=11 // pred_check_branch
          %188 = sbr.rel (%p186) target = $region16
        $region15: #{tpu_custom_call.1} parent=11 // pred_region
          _
        $region16: #{tpu_custom_call.1} parent=11 // pred_fallthru
          _
        // Predicated region
        $region17: #{tpu_custom_call.1} parent=11 // pred_check
          %p189 = pneg %p68
        $region18: #{tpu_custom_call.1} parent=11 // pred_check_branch
          %191 = sbr.rel (%p189) target = $region20
        $region19: #{tpu_custom_call.1} parent=11 // pred_region
          _
        $region20: #{tpu_custom_call.1} parent=11 // pred_fallthru
          _
        // Predicated region
        $region21: #{tpu_custom_call.1} parent=11 // pred_check
          %p192 = pneg %p89
        $region22: #{tpu_custom_call.1} parent=11 // pred_check_branch
          %194 = sbr.rel (%p192) target = $region24
        $region23: #{tpu_custom_call.1} parent=11 // pred_region
          _
        $region24: #{tpu_custom_call.1} parent=11 // pred_fallthru
          _
        // Predicated region
        $region25: #{tpu_custom_call.1} parent=11 // pred_check
          %p195 = pneg %p115
        $region26: #{tpu_custom_call.1} parent=11 // pred_check_branch
          %197 = sbr.rel (%p195) target = $region28
        $region27: #{tpu_custom_call.1} parent=11 // pred_region
          %p198 = scmp.lt.s32.totalorder %s23, 0
          %s199 = scalar_select %p198, %s23, 0
          %s200 = smul.addr %s199, 2
          %s201 = scalar_lea.vmem %s3, %s200
        $region28: #{tpu_custom_call.1} parent=11 // pred_fallthru
          _
      $region12: #{tpu_custom_call.1} parent=5 // pred_fallthru
        _
      %p202 = scmp.lt.s32.totalorder %s14, 2
      // Predicated region
      $region29: #{tpu_custom_call.1} parent=5 // pred_check
        %p203 = pneg %p202
      $region30: #{tpu_custom_call.1} parent=5 // pred_check_branch
        %205 = sbr.rel (%p203) target = $region32
      $region31: #{tpu_custom_call.1} parent=5 // pred_region
        // Predicated region
        $region33: #{tpu_custom_call.1} parent=31 // pred_check
          %p206 = pneg %p137
        $region34: #{tpu_custom_call.1} parent=31 // pred_check_branch
          %208 = sbr.rel (%p206) target = $region36
        $region35: #{tpu_custom_call.1} parent=31 // pred_region
          %p209 = scmp.lt.s32.totalorder %s22, 1
          %s210 = scalar_select %p209, %s22, 1
          %p211 = scmp.lt.s32.totalorder %s21, 0
          %s212 = scalar_select %p211, %s21, 0
          %s213 = sadd.s32 %s212, %s210
          %s214 = smul.addr %s213, 8
          %s215 = scalar_lea.vmem %s4, %s214
        $region36: #{tpu_custom_call.1} parent=31 // pred_fallthru
          _
      $region32: #{tpu_custom_call.1} parent=5 // pred_fallthru
        _
      %p216 = scmp.le.s32.totalorder 1, %s14
      %p217 = scmp.lt.s32.totalorder %s14, 3
      %p218 = pnand %p216, %p217
      %p219 = pneg %p218
      // Predicated region
      $region37: #{tpu_custom_call.1} parent=5 // pred_check
        _
      $region38: #{tpu_custom_call.1} parent=5 // pred_check_branch
        %221 = sbr.rel (%p218) target = $region40
      $region39: #{tpu_custom_call.1} parent=5 // pred_region
        %s222 = ssub.s32 %s14, 1
        %p223 = pneg %p47
        %p224 = pneg %p44
        %p225 = pneg %p68
        %p226 = pneg %p65
        %p227 = pneg %p89
        %p228 = pneg %p86
        %p229 = scmp.lt.s32.totalorder %s23, 0
        %s230 = scalar_select %p229, %s23, 0
        %s231 = smul.addr %s230, 2
        %s232 = scalar_lea.vmem %s3, %s231
        %p233 = pneg %p115
        %p234 = pneg %p112
        %p235 = scmp.lt.s32.totalorder %s24, 1
        %s236 = scalar_select %p235, %s24, 1
        %p237 = scmp.lt.s32.totalorder %s23, 0
        %s238 = scalar_select %p237, %s23, 0
        %s239 = sadd.s32 %s238, %s236
        %s240 = smul.addr %s239, 8
        %s241 = scalar_lea.vmem %s4, %s240
        %p242 = pneg %p143
        %p243 = pneg %p140
        %p244 = pneg %p171
        %p245 = pneg %p168
        %s246 = sand.u32 %s158, 1
        %s247 = scalar_lea.sflag [#allocation3], %s246
        %s248 = sand.u32 %s158, 1
        %s249 = smul.addr %s248, 8
        %s250 = scalar_lea.vmem [#allocation2], %s249
        %p251 = scmp.lt.s32.totalorder %s23, 0
        %s252 = scalar_select %p251, %s23, 0
        %s253 = smul.addr %s252, 2
        %s254 = scalar_lea.vmem %s3, %s253
        %p255 = scmp.lt.s32.totalorder %s24, 1
        %s256 = scalar_select %p255, %s24, 1
        %p257 = scmp.lt.s32.totalorder %s23, 0
        %s258 = scalar_select %p257, %s23, 0
        %s259 = sadd.s32 %s258, %s256
        %s260 = smul.addr %s259, 8
        %s261 = scalar_lea.vmem %s4, %s260
        %v262 = vld [vmem:[%s261] sm:$0xff]
        %v263 = vld [vmem:[%s0] sm:$0xff]
        %v264 = vld [vmem:[%s1] sm:$0xff]
        %v265 = vld [vmem:[%s2] sm:$0xff]
        %267 = vset.pattern.permute.xlu0 0
        %268 = vperm.xlu0 %267, %v265
        %v269 = vpop.permute.xlu0 %268
        %v271 = vmul.f32 %v269, %v262
        %273 = vset.pattern.permute.xlu0 0
        %274 = vperm.xlu0 %273, %v264
        %v275 = vpop.permute.xlu0 %274
        %v277 = vadd.f32 %v275, %v271
        %v278 = vmul.f32 %v262, %v277
        %280 = vset.pattern.permute.xlu0 0
        %281 = vperm.xlu0 %280, %v263
        %v282 = vpop.permute.xlu0 %281
        %v284 = vadd.f32 %v282, %v278
        %v285 = vld [vmem:[%s254] sm:$0x3]
        %v286 = vunpack.c.0.s8 %v285
        %vm287 = vcmp.ne.s32.totalorder %v286, 0
        %v288 = vmax.f32 %v262, 0.0
        %v289 = vsel %vm287, %v288, %v284
        %290 = vst [vmem:[%s250] sm:$0xff] %v289
        %s291 = sand.u32 %s158, 1
        %s292 = scalar_lea.sflag [#allocation3], %s291
        %s293 = sand.u32 %s158, 1
        %s294 = smul.addr %s293, 8
        %s295 = scalar_lea.vmem [#allocation2], %s294
        // Predicated region
        $region41: #{tpu_custom_call.1} parent=39 // pred_check
          %p296 = pneg %p168
        $region42: #{tpu_custom_call.1} parent=39 // pred_check_branch
          %298 = sbr.rel (%p296) target = $region44
        $region43: #{tpu_custom_call.1} parent=39 // pred_region
          %300 = vsyncadd %s292, 0
          %s301 = sadd.s32 %s23, %s24
          %s302 = smul.addr %s301, 8
          %s303 = scalar_lea.hbm %s5, %s302
          %s305 = sshll.u32 %s295, 4
          %s306 = int_to_ptr.vmem [resolvable:$true] %s305
          %s307 = sshll.u32 %s303, 4
          %s308 = int_to_ptr.hbm [resolvable:$true] %s307
          %310 = dma.vmem_to_hbm [thread:$0]  %s306, 128, %s308, %s292
        $region44: #{tpu_custom_call.1} parent=39 // pred_fallthru
          _
      $region40: #{tpu_custom_call.1} parent=5 // pred_fallthru
        _
      %p311 = scmp.le.s32.totalorder 2, %s14
      // Predicated region
      $region45: #{tpu_custom_call.1} parent=5 // pred_check
        %p312 = pneg %p311
      $region46: #{tpu_custom_call.1} parent=5 // pred_check_branch
        %314 = sbr.rel (%p312) target = $region48
      $region47: #{tpu_custom_call.1} parent=5 // pred_region
        %s315 = ssub.s32 %s14, 2
        // Predicated region
        $region49: #{tpu_custom_call.1} parent=47 // pred_check
          %p316 = pneg %p174
        $region50: #{tpu_custom_call.1} parent=47 // pred_check_branch
          %318 = sbr.rel (%p316) target = $region52
        $region51: #{tpu_custom_call.1} parent=47 // pred_region
          %s319 = sand.u32 %s159, 1
          %s320 = scalar_lea.sflag [#allocation3], %s319
          %s321 = sand.u32 %s159, 1
          %s322 = smul.addr %s321, 8
          %s323 = scalar_lea.vmem [#allocation2], %s322
          %325 = dma.done %s320, 128
        $region52: #{tpu_custom_call.1} parent=47 // pred_fallthru
          _
      $region48: #{tpu_custom_call.1} parent=5 // pred_fallthru
        _
    $region6: #{tpu_custom_call.1} parent=1 // loop_footer
      %s18 = sadd.s32 1, %s14
    $region7: #{tpu_custom_call.1} parent=1 // loop_footer_branch
      %13 = sbr.rel target = $region3
    $region8: #{tpu_custom_call.1} parent=1 // loop_exit
      _
    %326 = vsyncpa [#allocation3], 1
    %s327 = scalar_lea.sflag [#allocation3], 1
    %328 = vsyncpa %s327, 1

</llo_original>
